<compile_context>
chip_gen: v5e
topology: v5e:2x2
jax: 0.10.0
libtpu: 0.0.40
codegen_flags: <defaults>
</compile_context>

<pallas_src>
import functools

import jax
import jax.numpy as jnp
from jax.experimental import pallas as pl
from jax.experimental.pallas import tpu as pltpu


_MXU_TILE = 128
_VMEM_BUDGET = 40 << 20          # conservative per-TensorCore budget (v7x: 64 MiB/TC)


def _round_up(x, m):
    return ((x + m - 1) // m) * m


# ---------------------------------------------------------------------------
# Kernels
# ---------------------------------------------------------------------------
def _ffn_resident_kernel(x_ref, w1_ref, b1_ref, w2_ref, b2_ref, o_ref):
    """Weights fully resident in VMEM: grid = (row_tiles,), no scratch."""
    x = x_ref[...].astype(jnp.bfloat16)                 # per-tile cast (VPU)
    h = jnp.dot(x, w1_ref[...], preferred_element_type=jnp.float32)
    h = jnp.maximum(h + b1_ref[...], 0.0)               # bias + relu in f32
    y = jnp.dot(h.astype(jnp.bfloat16), w2_ref[...],
                preferred_element_type=jnp.float32)
    o_ref[...] = (y + b2_ref[...]).astype(o_ref.dtype)


def _ffn_stream_kernel(x_ref, w1_ref, b1_ref, w2_ref, b2_ref, o_ref, acc_ref):
    """ff_dim streamed in chunks (reduction axis last); f32 accumulator in VMEM."""
    k = pl.program_id(1)
    last = pl.num_programs(1) - 1

    @pl.when(k == 0)
    def _():
        acc_ref[...] = jnp.zeros_like(acc_ref)

    x = x_ref[...].astype(jnp.bfloat16)
    h = jnp.dot(x, w1_ref[...], preferred_element_type=jnp.float32)
    h = jnp.maximum(h + b1_ref[...], 0.0)
    partial = jnp.dot(h.astype(jnp.bfloat16), w2_ref[...],
                      preferred_element_type=jnp.float32)

    @pl.when(k < last)
    def _():
        acc_ref[...] += partial

    @pl.when(k == last)
    def _():
        # Fused finalize: fold the last partial product in directly, saving one
        # full (tm, dm_p) f32 accumulator store + reload per row tile.
        o_ref[...] = (acc_ref[...] + partial + b2_ref[...]).astype(o_ref.dtype)


# ---------------------------------------------------------------------------
# VMEM footprint estimates (conservative: 2x buffering on every pipelined block)
# ---------------------------------------------------------------------------
def _resident_vmem_bytes(tm, dm_p, ff_p, x_bytes, out_bytes):
    return (2 * tm * dm_p * x_bytes          # X tile (double-buffered)
            + 2 * dm_p * ff_p * 2            # W1 (bf16)
            + 2 * ff_p * dm_p * 2            # W2 (bf16)
            + 2 * tm * dm_p * out_bytes      # out tile (double-buffered)
            + 2 * (ff_p + dm_p) * 4          # biases
            + tm * ff_p * 6)                 # f32 hidden + its bf16 cast


def _stream_vmem_bytes(tm, tf, dm_p, ff_p, x_bytes, out_bytes):
    return (2 * tm * dm_p * x_bytes
            + 2 * dm_p * tf * 2
            + 2 * tf * dm_p * 2
            + 2 * tm * dm_p * out_bytes
            + 2 * (tf + dm_p) * 4
            + tm * dm_p * 4                  # f32 accumulator scratch
            + tm * tf * 6)


# ---------------------------------------------------------------------------
# Wrapper
# ---------------------------------------------------------------------------
@functools.partial(jax.jit, static_argnames=("tm", "tf", "force_stream"))
def feed_forward(x, w1, b1, w2, b2, *, tm=512, tf=512, force_stream=False):
    """x: (B, L, d_model) -> (B, L, d_model).  W1: (d_model, ff_dim), W2: (ff_dim, d_model)."""
    B, L, d_model = x.shape
    ff_dim = w1.shape[1]
    n_rows = B * L
    out_dtype = x.dtype
    x_bytes = x.dtype.itemsize
    out_bytes = jnp.dtype(out_dtype).itemsize

    # Lane-dense feature dims: pad d_model / ff_dim up to multiples of 128.
    dm_p = _round_up(d_model, 128)
    ff_p = _round_up(ff_dim, 128)

    # Row tile: multiple of 128 (fills the MXU & bf16 packed layout), never
    # larger than the (padded) row count.
    tm = max(_MXU_TILE, min((tm // _MXU_TILE) * _MXU_TILE,
                            _round_up(n_rows, _MXU_TILE)))
    # Prefer >= 2 row tiles so the "parallel" row axis can split across the two
    # TensorCores of a v7x megacore.
    if _round_up(n_rows, tm) == tm and n_rows > _MXU_TILE:
        tm = max(_MXU_TILE, _round_up(-(-n_rows // 2), _MXU_TILE))

    # ---- choose path: weights resident vs. ff-streaming ----
    resident = (not force_stream) and (
        _resident_vmem_bytes(tm, dm_p, ff_p, x_bytes, out_bytes) <= _VMEM_BUDGET)
    if resident:
        tf = ff_p
    else:
        tf = max(128, min((tf // 128) * 128, ff_p))
        while ff_p % tf:
            tf -= 128
        # Shrink tiles until the streaming footprint fits the budget.
        while (_stream_vmem_bytes(tm, tf, dm_p, ff_p, x_bytes, out_bytes) > _VMEM_BUDGET
               and (tm > _MXU_TILE or tf > 128)):
            if tm > _MXU_TILE:
                tm -= _MXU_TILE
            else:
                tf -= 128
            while ff_p % tf:
                tf -= 128

    n_pad = _round_up(n_rows, tm)
    n_row_tiles = n_pad // tm

    # ---- pad to lane-dense / tile-aligned shapes ----
    x2 = x.reshape(n_rows, d_model)
    if (n_pad, dm_p) != (n_rows, d_model):
        x2 = jnp.pad(x2, ((0, n_pad - n_rows), (0, dm_p - d_model)))
    if (dm_p, ff_p) != (d_model, ff_dim):
        w1 = jnp.pad(w1, ((0, dm_p - d_model), (0, ff_p - ff_dim)))
        w2 = jnp.pad(w2, ((0, ff_p - ff_dim), (0, dm_p - d_model)))
        b1 = jnp.pad(b1, (0, ff_p - ff_dim))
        b2 = jnp.pad(b2, (0, dm_p - d_model))

    # Weights as bf16 MXU operands (tiny vs. activations). X keeps its dtype and
    # is cast per-tile inside the kernel (no extra wrapper HBM pass over X).
    w1 = w1.astype(jnp.bfloat16)
    w2 = w2.astype(jnp.bfloat16)
    b1_2d = b1.reshape(1, ff_p).astype(jnp.float32)
    b2_2d = b2.reshape(1, dm_p).astype(jnp.float32)

    weight_bytes = (w1.size + w2.size) * 2 + (b1_2d.size + b2_2d.size) * 4

    if resident:
        kernel = _ffn_resident_kernel
        grid = (n_row_tiles,)
        in_specs = [
            pl.BlockSpec((tm, dm_p), lambda i: (i, 0)),      # X row tile
            pl.BlockSpec((dm_p, ff_p), lambda i: (0, 0)),    # W1 (resident)
            pl.BlockSpec((1, ff_p), lambda i: (0, 0)),       # b1 (resident)
            pl.BlockSpec((ff_p, dm_p), lambda i: (0, 0)),    # W2 (resident)
            pl.BlockSpec((1, dm_p), lambda i: (0, 0)),       # b2 (resident)
        ]
        out_specs = pl.BlockSpec((tm, dm_p), lambda i: (i, 0))
        scratch_shapes = []
        semantics = ("parallel",)
        est_vmem = _resident_vmem_bytes(tm, dm_p, ff_p, x_bytes, out_bytes)
        bytes_accessed = n_pad * dm_p * (x_bytes + out_bytes) + weight_bytes
    else:
        kernel = _ffn_stream_kernel
        grid = (n_row_tiles, ff_p // tf)
        in_specs = [
            pl.BlockSpec((tm, dm_p), lambda i, k: (i, 0)),   # X row tile
            pl.BlockSpec((dm_p, tf), lambda i, k: (0, k)),   # W1 ff-chunk
            pl.BlockSpec((1, tf), lambda i, k: (0, k)),      # b1 ff-chunk
            pl.BlockSpec((tf, dm_p), lambda i, k: (k, 0)),   # W2 ff-chunk
            pl.BlockSpec((1, dm_p), lambda i, k: (0, 0)),    # b2 (tiny, resident)
        ]
        out_specs = pl.BlockSpec((tm, dm_p), lambda i, k: (i, 0))
        scratch_shapes = [pltpu.VMEM((tm, dm_p), jnp.float32)]
        semantics = ("parallel", "arbitrary")
        est_vmem = _stream_vmem_bytes(tm, tf, dm_p, ff_p, x_bytes, out_bytes)
        # Weights are re-streamed from HBM once per row tile on this path.
        bytes_accessed = (n_pad * dm_p * (x_bytes + out_bytes)
                          + weight_bytes * n_row_tiles)

    cost = pl.CostEstimate(
        flops=4 * n_rows * d_model * ff_dim,       # two matmuls, 2*M*K*N each
        transcendentals=0,
        bytes_accessed=int(bytes_accessed),
    )

    out = pl.pallas_call(
        kernel,
        out_shape=jax.ShapeDtypeStruct((n_pad, dm_p), out_dtype),
        grid_spec=pltpu.PrefetchScalarGridSpec(
            num_scalar_prefetch=0,
            grid=grid,
            in_specs=in_specs,
            out_specs=out_specs,
            scratch_shapes=scratch_shapes,
        ),
        compiler_params=pltpu.CompilerParams(
            dimension_semantics=semantics,
            vmem_limit_bytes=int(min(max(est_vmem + (8 << 20), 32 << 20), 64 << 20)),
        ),
        cost_estimate=cost,
    )(x2, w1, b1_2d, w2, b2_2d)

    return out[:n_rows, :d_model].reshape(B, L, d_model)


def _reference_bf16(x, w1, b1, w2, b2):
    # Mirrors the kernel's numerics: bf16 operands, f32 accumulation, f32 bias/relu,
    # bf16 re-cast of the hidden activations before the second matmul.
    f32 = jnp.float32
    hp = jax.lax.Precision.HIGHEST
    xb = x.astype(jnp.bfloat16).astype(f32)
    w1b = w1.astype(jnp.bfloat16).astype(f32)
    w2b = w2.astype(jnp.bfloat16).astype(f32)
    h = jnp.maximum(jnp.einsum("bld,df->blf", xb, w1b, precision=hp) + b1, 0.0)
    hb = h.astype(jnp.bfloat16).astype(f32)
    return jnp.einsum("blf,fd->bld", hb, w2b, precision=hp) + b2


if __name__ == "__main__":
    B, L, d_model, ff_dim = 2, 8, 32, 128

    key = jax.random.PRNGKey(0)
    kx, k1, kb1, k2, kb2 = jax.random.split(key, 5)

    x = jax.random.normal(kx, (B, L, d_model), dtype=jnp.float32)

    # PyTorch stores conv1 weight as (ff_dim, d_model, 1); we keep the transposed
    # dense form (d_model, ff_dim) so the kernel does X @ W1 directly.
    bound1 = 1.0 / (d_model ** 0.5)
    w1 = jax.random.uniform(k1, (d_model, ff_dim), jnp.float32, -bound1, bound1)
    b1 = jax.random.uniform(kb1, (ff_dim,), jnp.float32, -bound1, bound1)

    bound2 = 1.0 / (ff_dim ** 0.5)
    w2 = jax.random.uniform(k2, (ff_dim, d_model), jnp.float32, -bound2, bound2)
    b2 = jax.random.uniform(kb2, (d_model,), jnp.float32, -bound2, bound2)

    ref = _reference_bf16(x, w1, b1, w2, b2)

    # Weights-resident fast path (default for these sizes).
    out = feed_forward(x, w1, b1, w2, b2)
    out = jax.block_until_ready(out)
    assert out.shape == (B, L, d_model)
    assert jnp.allclose(out.astype(jnp.float32), ref, atol=2e-3, rtol=2e-3), \
        "resident path mismatch vs bf16-matched reference"

    # Streaming fallback path (exercised explicitly for correctness coverage).
    out_s = feed_forward(x, w1, b1, w2, b2, force_stream=True)
    out_s = jax.block_until_ready(out_s)
    assert jnp.allclose(out_s.astype(jnp.float32), ref, atol=2e-3, rtol=2e-3), \
        "streaming path mismatch vs bf16-matched reference"

    print("KERNEL_OK")
</pallas_src>

<mosaic_0001>
module attributes {stable_mosaic.version = 11 : i64} {
  func.func @_ffn_resident_kernel(%arg0: i32, %arg1: memref<128x128xf32, #tpu.memory_space<vmem>>, %arg2: memref<128x128xbf16, #tpu.memory_space<vmem>>, %arg3: memref<1x128xf32, #tpu.memory_space<vmem>>, %arg4: memref<128x128xbf16, #tpu.memory_space<vmem>>, %arg5: memref<1x128xf32, #tpu.memory_space<vmem>>, %arg6: memref<128x128xf32, #tpu.memory_space<vmem>>) attributes {dimension_semantics = [#tpu.dimension_semantics<parallel>], iteration_bounds = array<i64: 1>, scalar_prefetch = 0 : i64, scratch_operands = 0 : i64, tpu.core_type = #tpu.core_type<tc>, window_params = [{transform_indices = @transform_0, window_bounds = array<i64: 128, 128>}, {pipeline_mode = #tpu.pipeline_mode<synchronous>, transform_indices = @transform_1, window_bounds = array<i64: 128, 128>}, {pipeline_mode = #tpu.pipeline_mode<synchronous>, transform_indices = @transform_2, window_bounds = array<i64: 1, 128>}, {pipeline_mode = #tpu.pipeline_mode<synchronous>, transform_indices = @transform_3, window_bounds = array<i64: 128, 128>}, {pipeline_mode = #tpu.pipeline_mode<synchronous>, transform_indices = @transform_4, window_bounds = array<i64: 1, 128>}, {transform_indices = @transform_5, window_bounds = array<i64: 128, 128>}]} {
    %c0 = arith.constant 0 : index
    %c0_0 = arith.constant 0 : index
    %0 = vector.load %arg1[%c0, %c0_0] : memref<128x128xf32, #tpu.memory_space<vmem>>, vector<128x128xf32>
    %1 = arith.truncf %0 : vector<128x128xf32> to vector<128x128xbf16>
    %c0_1 = arith.constant 0 : index
    %c0_2 = arith.constant 0 : index
    %2 = vector.load %arg2[%c0_1, %c0_2] : memref<128x128xbf16, #tpu.memory_space<vmem>>, vector<128x128xbf16>
    %cst = arith.constant dense<0.000000e+00> : vector<128x128xf32>
    %3 = tpu.matmul %1, %2, %cst {dimension_numbers = #tpu.dot_dimension_numbers<[1], [0], [0], [1], [0, 0, 1, 1], [], []>} : vector<128x128xbf16>, vector<128x128xbf16>, vector<128x128xf32> -> vector<128x128xf32>
    %c0_3 = arith.constant 0 : index
    %c0_4 = arith.constant 0 : index
    %4 = vector.load %arg3[%c0_3, %c0_4] : memref<1x128xf32, #tpu.memory_space<vmem>>, vector<1x128xf32>
    %5 = vector.broadcast %4 : vector<1x128xf32> to vector<128x128xf32>
    %6 = arith.addf %3, %5 : vector<128x128xf32>
    %cst_5 = arith.constant 0.000000e+00 : f32
    %7 = vector.broadcast %cst_5 : f32 to vector<128x128xf32>
    %8 = arith.maximumf %6, %7 : vector<128x128xf32>
    %9 = arith.truncf %8 : vector<128x128xf32> to vector<128x128xbf16>
    %c0_6 = arith.constant 0 : index
    %c0_7 = arith.constant 0 : index
    %10 = vector.load %arg4[%c0_6, %c0_7] : memref<128x128xbf16, #tpu.memory_space<vmem>>, vector<128x128xbf16>
    %cst_8 = arith.constant dense<0.000000e+00> : vector<128x128xf32>
    %11 = tpu.matmul %9, %10, %cst_8 {dimension_numbers = #tpu.dot_dimension_numbers<[1], [0], [0], [1], [0, 0, 1, 1], [], []>} : vector<128x128xbf16>, vector<128x128xbf16>, vector<128x128xf32> -> vector<128x128xf32>
    %c0_9 = arith.constant 0 : index
    %c0_10 = arith.constant 0 : index
    %12 = vector.load %arg5[%c0_9, %c0_10] : memref<1x128xf32, #tpu.memory_space<vmem>>, vector<1x128xf32>
    %13 = vector.broadcast %12 : vector<1x128xf32> to vector<128x128xf32>
    %14 = arith.addf %11, %13 : vector<128x128xf32>
    %c0_11 = arith.constant 0 : index
    %c0_12 = arith.constant 0 : index
    %15 = vector.load %arg6[%c0_11, %c0_12] : memref<128x128xf32, #tpu.memory_space<vmem>>, vector<128x128xf32>
    tpu.vector_store %arg6[%c0_11, %c0_12], %14 {strides = array<i32>} : memref<128x128xf32, #tpu.memory_space<vmem>>, vector<128x128xf32>,
    return
  }
  func.func @transform_0(%arg0: i32) -> (i32, i32) {
    %c0_i32 = arith.constant 0 : i32
    %c0_i32_0 = arith.constant 0 : i32
    return %arg0, %c0_i32 : i32, i32
  }
  func.func @transform_1(%arg0: i32) -> (i32, i32) {
    %c0_i32 = arith.constant 0 : i32
    %c0_i32_0 = arith.constant 0 : i32
    %c0_i32_1 = arith.constant 0 : i32
    return %c0_i32, %c0_i32_0 : i32, i32
  }
  func.func @transform_2(%arg0: i32) -> (i32, i32) {
    %c0_i32 = arith.constant 0 : i32
    %c0_i32_0 = arith.constant 0 : i32
    %c0_i32_1 = arith.constant 0 : i32
    return %c0_i32, %c0_i32_0 : i32, i32
  }
  func.func @transform_3(%arg0: i32) -> (i32, i32) {
    %c0_i32 = arith.constant 0 : i32
    %c0_i32_0 = arith.constant 0 : i32
    %c0_i32_1 = arith.constant 0 : i32
    return %c0_i32, %c0_i32_0 : i32, i32
  }
  func.func @transform_4(%arg0: i32) -> (i32, i32) {
    %c0_i32 = arith.constant 0 : i32
    %c0_i32_0 = arith.constant 0 : i32
    %c0_i32_1 = arith.constant 0 : i32
    return %c0_i32, %c0_i32_0 : i32, i32
  }
  func.func @transform_5(%arg0: i32) -> (i32, i32) {
    %c0_i32 = arith.constant 0 : i32
    %c0_i32_0 = arith.constant 0 : i32
    return %arg0, %c0_i32 : i32, i32
  }
}

</mosaic_0001>

<llo_original>
// kernel: feed_forward.1
$region0: #{feed_forward.1}
  #allocation0 [shape = 'u32[]', space=smem, size = 0x4, offset = 0x4, fixed_abs, tag = 'smem constant byte address 0x4 - core index']
  #allocation1 [shape = 'u32[72,128]{1,0:T(1,128)}', space=vmem, size = 0x9000, scoped, tag = 'internal scratch']
  %s0 = inlined_call_operand.vmem [shape: f32[128,128], index: 0, kind: input, shape index: {}]
  %s1 = inlined_call_operand.vmem [shape: bf16[128,128], index: 1, kind: input, shape index: {}]
  %s2 = inlined_call_operand.vmem [shape: f32[1,128], index: 2, kind: input, shape index: {}]
  %s3 = inlined_call_operand.vmem [shape: bf16[128,128], index: 3, kind: input, shape index: {}]
  %s4 = inlined_call_operand.vmem [shape: f32[1,128], index: 4, kind: input, shape index: {}]
  %s5 = inlined_call_operand.vmem [shape: f32[128,128], index: 5, kind: output, shape index: {}]
  %s6 = sld [smem:[#allocation0]]
  $region30: #{feed_forward.1} parent=0
    _
  %s8 = ssub.s32 1, %s6
  %s9 = scalar_select 0, %s8, %s6
  // Predicated region
  $region2: #{feed_forward.1} parent=0 // pred_check
    _
  $region3: #{feed_forward.1} parent=0 // pred_check_branch
    %11 = sbr.rel (0) target = $region5
  $region4: #{feed_forward.1} parent=0 // pred_region
    _
  $region5: #{feed_forward.1} parent=0 // pred_fallthru
    _
  // Predicated region
  $region6: #{feed_forward.1} parent=0 // pred_check
    _
  $region7: #{feed_forward.1} parent=0 // pred_check_branch
    %13 = sbr.rel (0) target = $region9
  $region8: #{feed_forward.1} parent=0 // pred_region
    _
  $region9: #{feed_forward.1} parent=0 // pred_fallthru
    _
  // Predicated region
  $region10: #{feed_forward.1} parent=0 // pred_check
    _
  $region11: #{feed_forward.1} parent=0 // pred_check_branch
    %15 = sbr.rel (0) target = $region13
  $region12: #{feed_forward.1} parent=0 // pred_region
    _
  $region13: #{feed_forward.1} parent=0 // pred_fallthru
    _
  // Predicated region
  $region14: #{feed_forward.1} parent=0 // pred_check
    _
  $region15: #{feed_forward.1} parent=0 // pred_check_branch
    %17 = sbr.rel (0) target = $region17
  $region16: #{feed_forward.1} parent=0 // pred_region
    _
  $region17: #{feed_forward.1} parent=0 // pred_fallthru
    _
  // Predicated region
  $region18: #{feed_forward.1} parent=0 // pred_check
    _
  $region19: #{feed_forward.1} parent=0 // pred_check_branch
    %19 = sbr.rel (0) target = $region21
  $region20: #{feed_forward.1} parent=0 // pred_region
    _
  $region21: #{feed_forward.1} parent=0 // pred_fallthru
    _
  %v20 = vld [vmem:[%s0] sm:$0xff]
  %v21 = vld [vmem:[%s0 + $0x8] sm:$0xff]
  %v22 = vld [vmem:[%s0 + $0x10] sm:$0xff]
  %v23 = vld [vmem:[%s0 + $0x18] sm:$0xff]
  %v24 = vld [vmem:[%s0 + $0x20] sm:$0xff]
  %v25 = vld [vmem:[%s0 + $0x28] sm:$0xff]
  %v26 = vld [vmem:[%s0 + $0x30] sm:$0xff]
  %v27 = vld [vmem:[%s0 + $0x38] sm:$0xff]
  %v28 = vld [vmem:[%s0 + $0x40] sm:$0xff]
  %v29 = vld [vmem:[%s0 + $0x48] sm:$0xff]
  %v30 = vld [vmem:[%s0 + $0x50] sm:$0xff]
  %v31 = vld [vmem:[%s0 + $0x58] sm:$0xff]
  %v32 = vld [vmem:[%s0 + $0x60] sm:$0xff]
  %v33 = vld [vmem:[%s0 + $0x68] sm:$0xff]
  %v34 = vld [vmem:[%s0 + $0x70] sm:$0xff]
  %v35 = vld [vmem:[%s0 + $0x78] sm:$0xff]
  %v36 = vpack.c.bf16 %v21, %v20
  %v37 = vpack.c.bf16 %v23, %v22
  %v38 = vpack.c.bf16 %v25, %v24
  %v39 = vpack.c.bf16 %v27, %v26
  %v40 = vpack.c.bf16 %v29, %v28
  %v41 = vpack.c.bf16 %v31, %v30
  %v42 = vpack.c.bf16 %v33, %v32
  %v43 = vpack.c.bf16 %v35, %v34
  %v44 = vld [vmem:[%s1] sm:$0xf]
  %v45 = vld [vmem:[%s1 + $0x4] sm:$0xf]
  %v46 = vld [vmem:[%s1 + $0x8] sm:$0xf]
  %v47 = vld [vmem:[%s1 + $0xc] sm:$0xf]
  %v48 = vld [vmem:[%s1 + $0x10] sm:$0xf]
  %v49 = vld [vmem:[%s1 + $0x14] sm:$0xf]
  %v50 = vld [vmem:[%s1 + $0x18] sm:$0xf]
  %v51 = vld [vmem:[%s1 + $0x1c] sm:$0xf]
  %v52 = vld [vmem:[%s1 + $0x20] sm:$0xf]
  %v53 = vld [vmem:[%s1 + $0x24] sm:$0xf]
  %v54 = vld [vmem:[%s1 + $0x28] sm:$0xf]
  %v55 = vld [vmem:[%s1 + $0x2c] sm:$0xf]
  %v56 = vld [vmem:[%s1 + $0x30] sm:$0xf]
  %v57 = vld [vmem:[%s1 + $0x34] sm:$0xf]
  %v58 = vld [vmem:[%s1 + $0x38] sm:$0xf]
  %v59 = vld [vmem:[%s1 + $0x3c] sm:$0xf]
  %v60 = vld [vmem:[%s2] sm:$0x1]
  %v62 = vperm.slane %v60, 0
  %v80 = vunpack.c.l.b16 %v44
  %v81 = vunpack.c.l.b16 %v45
  %v82 = vunpack.c.l.b16 %v46
  %v83 = vunpack.c.l.b16 %v47
  %v84 = vunpack.c.l.b16 %v48
  %v85 = vunpack.c.l.b16 %v49
  %v86 = vunpack.c.l.b16 %v50
  %v87 = vunpack.c.l.b16 %v51
  %v88 = vunpack.c.l.b16 %v52
  %v89 = vunpack.c.l.b16 %v53
  %v90 = vunpack.c.l.b16 %v54
  %v91 = vunpack.c.l.b16 %v55
  %v92 = vunpack.c.l.b16 %v56
  %v93 = vunpack.c.l.b16 %v57
  %v94 = vunpack.c.l.b16 %v58
  %v95 = vunpack.c.l.b16 %v59
  %v96 = vpack.c.b16 %v81, %v80
  %v97 = vpack.c.b16 %v83, %v82
  %v98 = vpack.c.b16 %v85, %v84
  %v99 = vpack.c.b16 %v87, %v86
  %v100 = vpack.c.b16 %v89, %v88
  %v101 = vpack.c.b16 %v91, %v90
  %v102 = vpack.c.b16 %v93, %v92
  %v103 = vpack.c.b16 %v95, %v94
  %112 = vmatpush.bf16.msra.mxu0 %v103
  %113 = vmatpush.bf16.msra.mxu0 %v102
  %114 = vmatpush.bf16.msra.mxu0 %v101
  %115 = vmatpush.bf16.msra.mxu0 %v100
  %116 = vmatpush.bf16.msra.mxu0 %v99
  %117 = vmatpush.bf16.msra.mxu0 %v98
  %118 = vmatpush.bf16.msra.mxu0 %v97
  %119 = vmatpush.bf16.msra.mxu0 %v96
  %120 = vmatmul.bf16.gmra.mxu0 %v36
  %v121 = vpop.f32.mrf.mxu0
  %v122 = vadd.f32 %v62, %v121
  %v123 = vpop.f32.mrf.mxu0
  %v124 = vadd.f32 %v62, %v123
  %125 = vmatmul.bf16.gmra.mxu0 %v37
  %v126 = vpop.f32.mrf.mxu0
  %v127 = vadd.f32 %v62, %v126
  %v128 = vpop.f32.mrf.mxu0
  %v129 = vadd.f32 %v62, %v128
  %130 = vmatmul.bf16.gmra.mxu0 %v38
  %v131 = vpop.f32.mrf.mxu0
  %v132 = vadd.f32 %v62, %v131
  %v133 = vpop.f32.mrf.mxu0
  %v134 = vadd.f32 %v62, %v133
  %135 = vmatmul.bf16.gmra.mxu0 %v39
  %v136 = vpop.f32.mrf.mxu0
  %v137 = vadd.f32 %v62, %v136
  %v138 = vpop.f32.mrf.mxu0
  %v139 = vadd.f32 %v62, %v138
  %140 = vmatmul.bf16.gmra.mxu0 %v40
  %v141 = vpop.f32.mrf.mxu0
  %v142 = vadd.f32 %v62, %v141
  %v143 = vpop.f32.mrf.mxu0
  %v144 = vadd.f32 %v62, %v143
  %145 = vmatmul.bf16.gmra.mxu0 %v41
  %v146 = vpop.f32.mrf.mxu0
  %v147 = vadd.f32 %v62, %v146
  %v148 = vpop.f32.mrf.mxu0
  %v149 = vadd.f32 %v62, %v148
  %150 = vmatmul.bf16.gmra.mxu0 %v42
  %v151 = vpop.f32.mrf.mxu0
  %v152 = vadd.f32 %v62, %v151
  %v153 = vpop.f32.mrf.mxu0
  %v154 = vadd.f32 %v62, %v153
  %155 = vmatmul.bf16.gmra.mxu0 %v43
  %v156 = vpop.f32.mrf.mxu0
  %v157 = vadd.f32 %v62, %v156
  %v158 = vpop.f32.mrf.mxu0
  %v159 = vadd.f32 %v62, %v158
  %160 = vdwg.mxu0
  %v161 = vmax.f32 %v122, 0.0
  %v162 = vmax.f32 %v124, 0.0
  %v163 = vmax.f32 %v127, 0.0
  %v164 = vmax.f32 %v129, 0.0
  %v165 = vmax.f32 %v132, 0.0
  %v166 = vmax.f32 %v134, 0.0
  %v167 = vmax.f32 %v137, 0.0
  %v168 = vmax.f32 %v139, 0.0
  %v169 = vmax.f32 %v142, 0.0
  %v170 = vmax.f32 %v144, 0.0
  %v171 = vmax.f32 %v147, 0.0
  %v172 = vmax.f32 %v149, 0.0
  %v173 = vmax.f32 %v152, 0.0
  %v174 = vmax.f32 %v154, 0.0
  %v175 = vmax.f32 %v157, 0.0
  %v176 = vmax.f32 %v159, 0.0
  %v177 = vpack.c.bf16 %v162, %v161
  %v178 = vpack.c.bf16 %v164, %v163
  %v179 = vpack.c.bf16 %v166, %v165
  %v180 = vpack.c.bf16 %v168, %v167
  %v181 = vpack.c.bf16 %v170, %v169
  %v182 = vpack.c.bf16 %v172, %v171
  %v183 = vpack.c.bf16 %v174, %v173
  %v184 = vpack.c.bf16 %v176, %v175
  %v185 = vld [vmem:[%s3] sm:$0xf]
  %v186 = vld [vmem:[%s3 + $0x4] sm:$0xf]
  %v187 = vld [vmem:[%s3 + $0x8] sm:$0xf]
  %v188 = vld [vmem:[%s3 + $0xc] sm:$0xf]
  %v189 = vld [vmem:[%s3 + $0x10] sm:$0xf]
  %v190 = vld [vmem:[%s3 + $0x14] sm:$0xf]
  %v191 = vld [vmem:[%s3 + $0x18] sm:$0xf]
  %v192 = vld [vmem:[%s3 + $0x1c] sm:$0xf]
  %v193 = vld [vmem:[%s3 + $0x20] sm:$0xf]
  %v194 = vld [vmem:[%s3 + $0x24] sm:$0xf]
  %v195 = vld [vmem:[%s3 + $0x28] sm:$0xf]
  %v196 = vld [vmem:[%s3 + $0x2c] sm:$0xf]
  %v197 = vld [vmem:[%s3 + $0x30] sm:$0xf]
  %v198 = vld [vmem:[%s3 + $0x34] sm:$0xf]
  %v199 = vld [vmem:[%s3 + $0x38] sm:$0xf]
  %v200 = vld [vmem:[%s3 + $0x3c] sm:$0xf]
  %v201 = vld [vmem:[%s4] sm:$0x1]
  %v203 = vperm.slane %v201, 0
  %v221 = vunpack.c.l.b16 %v185
  %v222 = vunpack.c.l.b16 %v186
  %v223 = vunpack.c.l.b16 %v187
  %v224 = vunpack.c.l.b16 %v188
  %v225 = vunpack.c.l.b16 %v189
  %v226 = vunpack.c.l.b16 %v190
  %v227 = vunpack.c.l.b16 %v191
  %v228 = vunpack.c.l.b16 %v192
  %v229 = vunpack.c.l.b16 %v193
  %v230 = vunpack.c.l.b16 %v194
  %v231 = vunpack.c.l.b16 %v195
  %v232 = vunpack.c.l.b16 %v196
  %v233 = vunpack.c.l.b16 %v197
  %v234 = vunpack.c.l.b16 %v198
  %v235 = vunpack.c.l.b16 %v199
  %v236 = vunpack.c.l.b16 %v200
  %v237 = vpack.c.b16 %v222, %v221
  %v238 = vpack.c.b16 %v224, %v223
  %v239 = vpack.c.b16 %v226, %v225
  %v240 = vpack.c.b16 %v228, %v227
  %v241 = vpack.c.b16 %v230, %v229
  %v242 = vpack.c.b16 %v232, %v231
  %v243 = vpack.c.b16 %v234, %v233
  %v244 = vpack.c.b16 %v236, %v235
  %253 = vmatpush.bf16.msra.mxu0 %v244
  %254 = vmatpush.bf16.msra.mxu0 %v243
  %255 = vmatpush.bf16.msra.mxu0 %v242
  %256 = vmatpush.bf16.msra.mxu0 %v241
  %257 = vmatpush.bf16.msra.mxu0 %v240
  %258 = vmatpush.bf16.msra.mxu0 %v239
  %259 = vmatpush.bf16.msra.mxu0 %v238
  %260 = vmatpush.bf16.msra.mxu0 %v237
  %261 = vmatmul.bf16.gmra.mxu0 %v177
  %v262 = vpop.f32.mrf.mxu0
  %v263 = vadd.f32 %v203, %v262
  %v264 = vpop.f32.mrf.mxu0
  %v265 = vadd.f32 %v203, %v264
  %266 = vmatmul.bf16.gmra.mxu0 %v178
  %v267 = vpop.f32.mrf.mxu0
  %v268 = vadd.f32 %v203, %v267
  %v269 = vpop.f32.mrf.mxu0
  %v270 = vadd.f32 %v203, %v269
  %271 = vmatmul.bf16.gmra.mxu0 %v179
  %v272 = vpop.f32.mrf.mxu0
  %v273 = vadd.f32 %v203, %v272
  %v274 = vpop.f32.mrf.mxu0
  %v275 = vadd.f32 %v203, %v274
  %276 = vmatmul.bf16.gmra.mxu0 %v180
  %v277 = vpop.f32.mrf.mxu0
  %v278 = vadd.f32 %v203, %v277
  %v279 = vpop.f32.mrf.mxu0
  %v280 = vadd.f32 %v203, %v279
  %281 = vmatmul.bf16.gmra.mxu0 %v181
  %v282 = vpop.f32.mrf.mxu0
  %v283 = vadd.f32 %v203, %v282
  %v284 = vpop.f32.mrf.mxu0
  %v285 = vadd.f32 %v203, %v284
  %286 = vmatmul.bf16.gmra.mxu0 %v182
  %v287 = vpop.f32.mrf.mxu0
  %v288 = vadd.f32 %v203, %v287
  %v289 = vpop.f32.mrf.mxu0
  %v290 = vadd.f32 %v203, %v289
  %291 = vmatmul.bf16.gmra.mxu0 %v183
  %v292 = vpop.f32.mrf.mxu0
  %v293 = vadd.f32 %v203, %v292
  %v294 = vpop.f32.mrf.mxu0
  %v295 = vadd.f32 %v203, %v294
  %296 = vmatmul.bf16.gmra.mxu0 %v184
  %v297 = vpop.f32.mrf.mxu0
  %v298 = vadd.f32 %v203, %v297
  %v299 = vpop.f32.mrf.mxu0
  %v300 = vadd.f32 %v203, %v299
  %301 = vdwg.mxu0
  %302 = vst [vmem:[%s5] sm:$0xff] %v263
  %303 = vst [vmem:[%s5 + $0x8] sm:$0xff] %v265
  %304 = vst [vmem:[%s5 + $0x10] sm:$0xff] %v268
  %305 = vst [vmem:[%s5 + $0x18] sm:$0xff] %v270
  %306 = vst [vmem:[%s5 + $0x20] sm:$0xff] %v273
  %307 = vst [vmem:[%s5 + $0x28] sm:$0xff] %v275
  %308 = vst [vmem:[%s5 + $0x30] sm:$0xff] %v278
  %309 = vst [vmem:[%s5 + $0x38] sm:$0xff] %v280
  %310 = vst [vmem:[%s5 + $0x40] sm:$0xff] %v283
  %311 = vst [vmem:[%s5 + $0x48] sm:$0xff] %v285
  %312 = vst [vmem:[%s5 + $0x50] sm:$0xff] %v288
  %313 = vst [vmem:[%s5 + $0x58] sm:$0xff] %v290
  %314 = vst [vmem:[%s5 + $0x60] sm:$0xff] %v293
  %315 = vst [vmem:[%s5 + $0x68] sm:$0xff] %v295
  %316 = vst [vmem:[%s5 + $0x70] sm:$0xff] %v298
  %317 = vst [vmem:[%s5 + $0x78] sm:$0xff] %v300
  // Predicated region
  $region22: #{feed_forward.1} parent=0 // pred_check
    _
  $region23: #{feed_forward.1} parent=0 // pred_check_branch
    %319 = sbr.rel (0) target = $region25
  $region24: #{feed_forward.1} parent=0 // pred_region
    _
  $region25: #{feed_forward.1} parent=0 // pred_fallthru
    _
  // Predicated region
  $region26: #{feed_forward.1} parent=0 // pred_check
    _
  $region27: #{feed_forward.1} parent=0 // pred_check_branch
    %321 = sbr.rel (0) target = $region29
  $region28: #{feed_forward.1} parent=0 // pred_region
    _
  $region29: #{feed_forward.1} parent=0 // pred_fallthru
    _

</llo_original>
